<compile_context>
chip_gen: v7x
topology: tpu7x:2x2x1
jax: 0.10.0
libtpu: 0.0.40
codegen_flags: <defaults>
</compile_context>

<pallas_src>
import jax
import jax.numpy as jnp
from jax.experimental import pallas as pl
from jax.experimental.pallas import tpu as pltpu


def sgc_kernel(x_ref, w_ref, b_ref, o_ref):
    """o = x @ w + b with canonical (M,K)x(K,N) MXU matmul, f32 accumulation."""
    acc = jnp.dot(x_ref[...], w_ref[...], preferred_element_type=jnp.float32)
    o_ref[...] = (acc + b_ref[...]).astype(o_ref.dtype)


def sgc_forward(x, weight, bias, *, tm=None, use_bf16=True,
                vmem_budget_bytes=48 * 1024 * 1024):
    """x: (V, V) normalized adjacency, weight: (E, V) nn.Linear layout,
    bias: (E,). Returns (V, E) float32 == x @ weight.T + bias."""
    V, K = x.shape
    E, K2 = weight.shape
    assert K == V and K2 == V

    # One-time transpose to canonical (K, N) = (V, E): cheap wrapper-side
    # layout work instead of a per-step in-kernel relayout of the weight.
    w_t = weight.T

    in_dtype = jnp.bfloat16 if use_bf16 else jnp.float32
    x = x.astype(in_dtype)
    w_t = w_t.astype(in_dtype)
    b2 = bias.reshape(1, E).astype(jnp.float32)   # lane-aligned f32 row

    itemsize = jnp.dtype(in_dtype).itemsize

    def _vmem_bytes(tm_):
        # x block (double-buffered) + weight (single-buffered, grid-invariant)
        # + bias + f32 output block (double-buffered).
        return (2 * tm_ * V * itemsize + V * E * itemsize
                + E * 4 + 2 * tm_ * E * 4)

    if tm is None:
        # Single grid step by default (overhead-bound at small V; one extra
        # step = ~0.35 us of pure overhead on v5e/v6e).  Only shrink tm when
        # the full-K blocks would blow the VMEM budget (relevant for large
        # voc_size; v7x's 64 MiB is the binding constraint).
        tm = V
        while (tm > 8 and _vmem_bytes(tm) > vmem_budget_bytes
               and tm % 2 == 0 and (tm // 2) % 8 == 0):
            tm //= 2
    assert V % tm == 0 and tm % 8 == 0, (V, tm)
    grid_m = V // tm

    # Only raise the scoped VMEM limit when the tiling actually needs it.
    vmem_limit = None
    est = _vmem_bytes(tm)
    if est > 16 * 1024 * 1024:
        vmem_limit = int(min(max(2 * est, 32 * 1024 * 1024), vmem_budget_bytes))

    if grid_m > 1:
        # Grid-invariant operands never change across M blocks: single-buffer
        # them so VMEM does not hold a second, never-used pipeline buffer.
        w_spec = pl.BlockSpec((V, E), lambda i: (0, 0),
                              pipeline_mode=pl.Buffered(1))
        b_spec = pl.BlockSpec((1, E), lambda i: (0, 0),
                              pipeline_mode=pl.Buffered(1))
    else:
        w_spec = pl.BlockSpec((V, E), lambda i: (0, 0))
        b_spec = pl.BlockSpec((1, E), lambda i: (0, 0))

    cost = pl.CostEstimate(
        flops=2 * V * V * E,
        transcendentals=0,
        bytes_accessed=itemsize * (V * V + V * E) + 4 * (E + V * E),
    )

    return pl.pallas_call(
        sgc_kernel,
        out_shape=jax.ShapeDtypeStruct((V, E), jnp.float32),
        grid_spec=pltpu.PrefetchScalarGridSpec(
            num_scalar_prefetch=0,
            grid=(grid_m,),
            in_specs=[
                pl.BlockSpec((tm, V), lambda i: (i, 0)),  # x row-block, full K
                w_spec,                                   # weight (V, E), invariant
                b_spec,                                   # bias row (1, E)
            ],
            out_specs=pl.BlockSpec((tm, E), lambda i: (i, 0)),
        ),
        compiler_params=pltpu.CompilerParams(
            dimension_semantics=("parallel",),
            vmem_limit_bytes=vmem_limit,
        ),
        cost_estimate=cost,
    )(x, w_t, b2)


def normalize_adj(adj):
    """Row-normalize: D^{-1} adj, with inf (zero-row) inverse set to 0."""
    rowsum = adj.sum(axis=1)
    r_inv = jnp.where(rowsum == 0.0, 0.0, 1.0 / rowsum)
    return adj * r_inv[:, None]


if __name__ == "__main__":
    # Small, tile-friendly shapes: voc_size=256, emb_dim=128.
    V, E = 256, 128
    key = jax.random.PRNGKey(0)
    k_adj, k_w, k_b = jax.random.split(key, 3)

    # Synthetic 0/1 adjacency.
    adj_raw = (jax.random.uniform(k_adj, (V, V)) > 0.9).astype(jnp.float32)

    # __init__ preprocessing: x = normalize(adj + I)
    x = normalize_adj(adj_raw + jnp.eye(V, dtype=jnp.float32))

    # nn.Linear(size, emb_dim): weight (E, V), bias (E,). Deterministic init.
    bound = 1.0 / (V ** 0.5)
    weight = jax.random.uniform(k_w, (E, V), minval=-bound, maxval=bound,
                                dtype=jnp.float32)
    bias = jax.random.uniform(k_b, (E,), minval=-bound, maxval=bound,
                              dtype=jnp.float32)

    # Default fast path: bf16 inputs, f32 accumulation / output.
    out_fast = jax.block_until_ready(sgc_forward(x, weight, bias))
    # Exact f32 path for a tight correctness check of the kernel semantics.
    out_f32 = jax.block_until_ready(sgc_forward(x, weight, bias, use_bf16=False))

    # Reference (plain JAX): x @ W.T + b
    ref = x @ weight.T + bias
    assert out_fast.shape == (V, E) and out_f32.shape == (V, E)
    assert jnp.allclose(out_f32, ref, atol=1e-4, rtol=1e-4)
    assert jnp.allclose(out_fast, ref, atol=1e-2, rtol=1e-2)

    print("KERNEL_OK")
</pallas_src>

<mosaic_0001>
module attributes {stable_mosaic.version = 11 : i64} {
  func.func @sgc_kernel(%arg0: i32, %arg1: memref<256x256xbf16, #tpu.memory_space<vmem>>, %arg2: memref<256x128xbf16, #tpu.memory_space<vmem>>, %arg3: memref<1x128xf32, #tpu.memory_space<vmem>>, %arg4: memref<256x128xf32, #tpu.memory_space<vmem>>) attributes {dimension_semantics = [#tpu.dimension_semantics<parallel>], iteration_bounds = array<i64: 1>, scalar_prefetch = 0 : i64, scratch_operands = 0 : i64, tpu.core_type = #tpu.core_type<tc>, window_params = [{transform_indices = @transform_0, window_bounds = array<i64: 256, 256>}, {pipeline_mode = #tpu.pipeline_mode<synchronous>, transform_indices = @transform_1, window_bounds = array<i64: 256, 128>}, {pipeline_mode = #tpu.pipeline_mode<synchronous>, transform_indices = @transform_2, window_bounds = array<i64: 1, 128>}, {transform_indices = @transform_3, window_bounds = array<i64: 256, 128>}]} {
    %c0 = arith.constant 0 : index
    %c0_0 = arith.constant 0 : index
    %0 = vector.load %arg1[%c0, %c0_0] : memref<256x256xbf16, #tpu.memory_space<vmem>>, vector<256x256xbf16>
    %c0_1 = arith.constant 0 : index
    %c0_2 = arith.constant 0 : index
    %1 = vector.load %arg2[%c0_1, %c0_2] : memref<256x128xbf16, #tpu.memory_space<vmem>>, vector<256x128xbf16>
    %cst = arith.constant dense<0.000000e+00> : vector<256x128xf32>
    %2 = tpu.matmul %0, %1, %cst {dimension_numbers = #tpu.dot_dimension_numbers<[1], [0], [0], [1], [0, 0, 1, 1], [], []>} : vector<256x256xbf16>, vector<256x128xbf16>, vector<256x128xf32> -> vector<256x128xf32>
    %c0_3 = arith.constant 0 : index
    %c0_4 = arith.constant 0 : index
    %3 = vector.load %arg3[%c0_3, %c0_4] : memref<1x128xf32, #tpu.memory_space<vmem>>, vector<1x128xf32>
    %4 = vector.broadcast %3 : vector<1x128xf32> to vector<256x128xf32>
    %5 = arith.addf %2, %4 : vector<256x128xf32>
    %c0_5 = arith.constant 0 : index
    %c0_6 = arith.constant 0 : index
    %6 = vector.load %arg4[%c0_5, %c0_6] : memref<256x128xf32, #tpu.memory_space<vmem>>, vector<256x128xf32>
    tpu.vector_store %arg4[%c0_5, %c0_6], %5 {strides = array<i32>} : memref<256x128xf32, #tpu.memory_space<vmem>>, vector<256x128xf32>,
    return
  }
  func.func @transform_0(%arg0: i32) -> (i32, i32) {
    %c0_i32 = arith.constant 0 : i32
    %c0_i32_0 = arith.constant 0 : i32
    return %arg0, %c0_i32 : i32, i32
  }
  func.func @transform_1(%arg0: i32) -> (i32, i32) {
    %c0_i32 = arith.constant 0 : i32
    %c0_i32_0 = arith.constant 0 : i32
    %c0_i32_1 = arith.constant 0 : i32
    return %c0_i32, %c0_i32_0 : i32, i32
  }
  func.func @transform_2(%arg0: i32) -> (i32, i32) {
    %c0_i32 = arith.constant 0 : i32
    %c0_i32_0 = arith.constant 0 : i32
    %c0_i32_1 = arith.constant 0 : i32
    return %c0_i32, %c0_i32_0 : i32, i32
  }
  func.func @transform_3(%arg0: i32) -> (i32, i32) {
    %c0_i32 = arith.constant 0 : i32
    %c0_i32_0 = arith.constant 0 : i32
    return %arg0, %c0_i32 : i32, i32
  }
}

</mosaic_0001>

<llo_original>
// kernel: tpu_custom_call.1
$region0: #{tpu_custom_call.1}
  #allocation0 [shape = 'u32[]', space=smem, size = 0x4, offset = 0x4, fixed_abs, tag = 'smem constant byte address 0x4 - core index']
  #allocation1 [shape = 'u32[144,128]{1,0:T(1,128)}', space=vmem, size = 0x12000, scoped, tag = 'internal scratch']
  %s0 = inlined_call_operand.hbm [shape: bf16[256,256], index: 0, kind: input, shape index: {}]
  %s1 = inlined_call_operand.hbm [shape: bf16[256,128], index: 1, kind: input, shape index: {}]
  %s2 = inlined_call_operand.vmem [shape: f32[1,128], index: 2, kind: input, shape index: {}]
  %s3 = inlined_call_operand.hbm [shape: f32[256,128], index: 3, kind: output, shape index: {}]
  %s4 = sld [smem:[#allocation0]]
  $region30: #{tpu_custom_call.1} parent=0
    _
  %s6 = ssub.s32 1, %s4
  %s7 = scalar_select 0, %s6, %s4
  $region1: #{tpu_custom_call.1} parent=0
    #allocation2 [shape = 'u8[131072]{0}', space=vmem, size = 0x20000, scoped, tag = 'input window, operand 0, single buffered']
    #allocation3 [shape = 's32[1]{0}', space=sflag, size = 0x4, scoped, tag = 'scoped memory for tpu_custom_call.1']
    #allocation4 [shape = 's32[1]{0}', space=sflag, size = 0x4, scoped, tag = 'scoped memory for tpu_custom_call.1']
    #allocation5 [shape = 'u8[65536]{0}', space=vmem, size = 0x10000, scoped, tag = 'input window, operand 1, single buffered']
    #allocation6 [shape = 's32[1]{0}', space=sflag, size = 0x4, scoped, tag = 'scoped memory for tpu_custom_call.1']
    #allocation7 [shape = 'u8[131072]{0}', space=vmem, size = 0x20000, scoped, tag = 'output window, operand 0, single buffered']
    %8 = vsyncpa [#allocation3], 0
    %9 = vsyncpa [#allocation6], 0
    %10 = vsyncpa [#allocation4], 0
    // Predicated region
    $region2: #{tpu_custom_call.1} parent=1 // pred_check
      _
    $region3: #{tpu_custom_call.1} parent=1 // pred_check_branch
      %12 = sbr.rel (0) target = $region5
    $region4: #{tpu_custom_call.1} parent=1 // pred_region
      %s14 = ssub.s32 4096, 4096
      %15 = vsyncadd [#allocation3], %s14
      %s16 = sshll.u32 [#allocation2], 4
      %s17 = int_to_ptr.vmem [resolvable:$true] %s16
      %22 = dma.hbm_to_vmem [thread:$0]  %s0, 4096, %s17, [#allocation3], 128, 128, 8
    $region5: #{tpu_custom_call.1} parent=1 // pred_fallthru
      _
    // Predicated region
    $region6: #{tpu_custom_call.1} parent=1 // pred_check
      _
    $region7: #{tpu_custom_call.1} parent=1 // pred_check_branch
      %24 = sbr.rel (0) target = $region9
    $region8: #{tpu_custom_call.1} parent=1 // pred_region
      %s26 = ssub.s32 2048, 2048
      %27 = vsyncadd [#allocation6], %s26
      %s28 = sshll.u32 [#allocation5], 4
      %s29 = int_to_ptr.vmem [resolvable:$true] %s28
      %34 = dma.hbm_to_vmem [thread:$0]  %s1, 2048, %s29, [#allocation6], 64, 64, 4
    $region9: #{tpu_custom_call.1} parent=1 // pred_fallthru
      _
    // Predicated region
    $region10: #{tpu_custom_call.1} parent=1 // pred_check
      _
    $region11: #{tpu_custom_call.1} parent=1 // pred_check_branch
      %36 = sbr.rel (0) target = $region13
    $region12: #{tpu_custom_call.1} parent=1 // pred_region
      _
    $region13: #{tpu_custom_call.1} parent=1 // pred_fallthru
      _
    // Predicated region
    $region14: #{tpu_custom_call.1} parent=1 // pred_check
      _
    $region15: #{tpu_custom_call.1} parent=1 // pred_check_branch
      %38 = sbr.rel (0) target = $region17
    $region16: #{tpu_custom_call.1} parent=1 // pred_region
      %39 = dma.done [#allocation3], 4096
    $region17: #{tpu_custom_call.1} parent=1 // pred_fallthru
      _
    // Predicated region
    $region18: #{tpu_custom_call.1} parent=1 // pred_check
      _
    $region19: #{tpu_custom_call.1} parent=1 // pred_check_branch
      %41 = sbr.rel (0) target = $region21
    $region20: #{tpu_custom_call.1} parent=1 // pred_region
      %42 = dma.done [#allocation6], 2048
    $region21: #{tpu_custom_call.1} parent=1 // pred_fallthru
      _
    %v44 = vld [vmem:[#allocation2] sm:$0xff]
    %v45 = vld [vmem:[#allocation2 + $0x8] sm:$0xff]
    %v46 = vld [vmem:[#allocation2 + $0x10] sm:$0xff]
    %v47 = vld [vmem:[#allocation2 + $0x18] sm:$0xff]
    %v48 = vld [vmem:[#allocation2 + $0x20] sm:$0xff]
    %v49 = vld [vmem:[#allocation2 + $0x28] sm:$0xff]
    %v50 = vld [vmem:[#allocation2 + $0x30] sm:$0xff]
    %v51 = vld [vmem:[#allocation2 + $0x38] sm:$0xff]
    %v52 = vld [vmem:[#allocation2 + $0x40] sm:$0xff]
    %v53 = vld [vmem:[#allocation2 + $0x48] sm:$0xff]
    %v54 = vld [vmem:[#allocation2 + $0x50] sm:$0xff]
    %v55 = vld [vmem:[#allocation2 + $0x58] sm:$0xff]
    %v56 = vld [vmem:[#allocation2 + $0x60] sm:$0xff]
    %v57 = vld [vmem:[#allocation2 + $0x68] sm:$0xff]
    %v58 = vld [vmem:[#allocation2 + $0x70] sm:$0xff]
    %v59 = vld [vmem:[#allocation2 + $0x78] sm:$0xff]
    %v60 = vld [vmem:[#allocation2 + $0x80] sm:$0xff]
    %v61 = vld [vmem:[#allocation2 + $0x88] sm:$0xff]
    %v62 = vld [vmem:[#allocation2 + $0x90] sm:$0xff]
    %v63 = vld [vmem:[#allocation2 + $0x98] sm:$0xff]
    %v64 = vld [vmem:[#allocation2 + $0xa0] sm:$0xff]
    %v65 = vld [vmem:[#allocation2 + $0xa8] sm:$0xff]
    %v66 = vld [vmem:[#allocation2 + $0xb0] sm:$0xff]
    %v67 = vld [vmem:[#allocation2 + $0xb8] sm:$0xff]
    %v68 = vld [vmem:[#allocation2 + $0xc0] sm:$0xff]
    %v69 = vld [vmem:[#allocation2 + $0xc8] sm:$0xff]
    %v70 = vld [vmem:[#allocation2 + $0xd0] sm:$0xff]
    %v71 = vld [vmem:[#allocation2 + $0xd8] sm:$0xff]
    %v72 = vld [vmem:[#allocation2 + $0xe0] sm:$0xff]
    %v73 = vld [vmem:[#allocation2 + $0xe8] sm:$0xff]
    %v74 = vld [vmem:[#allocation2 + $0xf0] sm:$0xff]
    %v75 = vld [vmem:[#allocation2 + $0xf8] sm:$0xff]
    %v76 = vld [vmem:[#allocation5] sm:$0xf]
    %v77 = vld [vmem:[#allocation5 + $0x4] sm:$0xf]
    %v78 = vld [vmem:[#allocation5 + $0x8] sm:$0xf]
    %v79 = vld [vmem:[#allocation5 + $0xc] sm:$0xf]
    %v80 = vld [vmem:[#allocation5 + $0x10] sm:$0xf]
    %v81 = vld [vmem:[#allocation5 + $0x14] sm:$0xf]
    %v82 = vld [vmem:[#allocation5 + $0x18] sm:$0xf]
    %v83 = vld [vmem:[#allocation5 + $0x1c] sm:$0xf]
    %v84 = vld [vmem:[#allocation5 + $0x20] sm:$0xf]
    %v85 = vld [vmem:[#allocation5 + $0x24] sm:$0xf]
    %v86 = vld [vmem:[#allocation5 + $0x28] sm:$0xf]
    %v87 = vld [vmem:[#allocation5 + $0x2c] sm:$0xf]
    %v88 = vld [vmem:[#allocation5 + $0x30] sm:$0xf]
    %v89 = vld [vmem:[#allocation5 + $0x34] sm:$0xf]
    %v90 = vld [vmem:[#allocation5 + $0x38] sm:$0xf]
    %v91 = vld [vmem:[#allocation5 + $0x3c] sm:$0xf]
    %v92 = vld [vmem:[#allocation5 + $0x40] sm:$0xf]
    %v93 = vld [vmem:[#allocation5 + $0x44] sm:$0xf]
    %v94 = vld [vmem:[#allocation5 + $0x48] sm:$0xf]
    %v95 = vld [vmem:[#allocation5 + $0x4c] sm:$0xf]
    %v96 = vld [vmem:[#allocation5 + $0x50] sm:$0xf]
    %v97 = vld [vmem:[#allocation5 + $0x54] sm:$0xf]
    %v98 = vld [vmem:[#allocation5 + $0x58] sm:$0xf]
    %v99 = vld [vmem:[#allocation5 + $0x5c] sm:$0xf]
    %v100 = vld [vmem:[#allocation5 + $0x60] sm:$0xf]
    %v101 = vld [vmem:[#allocation5 + $0x64] sm:$0xf]
    %v102 = vld [vmem:[#allocation5 + $0x68] sm:$0xf]
    %v103 = vld [vmem:[#allocation5 + $0x6c] sm:$0xf]
    %v104 = vld [vmem:[#allocation5 + $0x70] sm:$0xf]
    %v105 = vld [vmem:[#allocation5 + $0x74] sm:$0xf]
    %v106 = vld [vmem:[#allocation5 + $0x78] sm:$0xf]
    %v107 = vld [vmem:[#allocation5 + $0x7c] sm:$0xf]
    %v108 = vld [vmem:[%s2] sm:$0x1]
    %v110 = vlaneseq
    %v111 = vshrl.u32 %v110, 7
    %v112 = vsub.s32 0, %v111
    %v113 = vrot.slane %v108, %v112
    %v147 = vunpack.c.l.b16 %v44
    %v148 = vunpack.c.h.b16 %v44
    %v149 = vunpack.c.l.b16 %v45
    %v150 = vunpack.c.h.b16 %v45
    %v151 = vunpack.c.l.b16 %v46
    %v152 = vunpack.c.h.b16 %v46
    %v153 = vunpack.c.l.b16 %v47
    %v154 = vunpack.c.h.b16 %v47
    %v155 = vunpack.c.l.b16 %v48
    %v156 = vunpack.c.h.b16 %v48
    %v157 = vunpack.c.l.b16 %v49
    %v158 = vunpack.c.h.b16 %v49
    %v159 = vunpack.c.l.b16 %v50
    %v160 = vunpack.c.h.b16 %v50
    %v161 = vunpack.c.l.b16 %v51
    %v162 = vunpack.c.h.b16 %v51
    %v163 = vunpack.c.l.b16 %v52
    %v164 = vunpack.c.h.b16 %v52
    %v165 = vunpack.c.l.b16 %v53
    %v166 = vunpack.c.h.b16 %v53
    %v167 = vunpack.c.l.b16 %v54
    %v168 = vunpack.c.h.b16 %v54
    %v169 = vunpack.c.l.b16 %v55
    %v170 = vunpack.c.h.b16 %v55
    %v171 = vunpack.c.l.b16 %v56
    %v172 = vunpack.c.h.b16 %v56
    %v173 = vunpack.c.l.b16 %v57
    %v174 = vunpack.c.h.b16 %v57
    %v175 = vunpack.c.l.b16 %v58
    %v176 = vunpack.c.h.b16 %v58
    %v177 = vunpack.c.l.b16 %v59
    %v178 = vunpack.c.h.b16 %v59
    %v179 = vunpack.c.l.b16 %v60
    %v180 = vunpack.c.h.b16 %v60
    %v181 = vunpack.c.l.b16 %v61
    %v182 = vunpack.c.h.b16 %v61
    %v183 = vunpack.c.l.b16 %v62
    %v184 = vunpack.c.h.b16 %v62
    %v185 = vunpack.c.l.b16 %v63
    %v186 = vunpack.c.h.b16 %v63
    %v187 = vunpack.c.l.b16 %v64
    %v188 = vunpack.c.h.b16 %v64
    %v189 = vunpack.c.l.b16 %v65
    %v190 = vunpack.c.h.b16 %v65
    %v191 = vunpack.c.l.b16 %v66
    %v192 = vunpack.c.h.b16 %v66
    %v193 = vunpack.c.l.b16 %v67
    %v194 = vunpack.c.h.b16 %v67
    %v195 = vunpack.c.l.b16 %v68
    %v196 = vunpack.c.h.b16 %v68
    %v197 = vunpack.c.l.b16 %v69
    %v198 = vunpack.c.h.b16 %v69
    %v199 = vunpack.c.l.b16 %v70
    %v200 = vunpack.c.h.b16 %v70
    %v201 = vunpack.c.l.b16 %v71
    %v202 = vunpack.c.h.b16 %v71
    %v203 = vunpack.c.l.b16 %v72
    %v204 = vunpack.c.h.b16 %v72
    %v205 = vunpack.c.l.b16 %v73
    %v206 = vunpack.c.h.b16 %v73
    %v207 = vunpack.c.l.b16 %v74
    %v208 = vunpack.c.h.b16 %v74
    %v209 = vunpack.c.l.b16 %v75
    %v210 = vunpack.c.h.b16 %v75
    %v211 = vpack.c.b16 %v149, %v147
    %v212 = vpack.c.b16 %v150, %v148
    %v213 = vpack.c.b16 %v153, %v151
    %v214 = vpack.c.b16 %v154, %v152
    %v215 = vpack.c.b16 %v157, %v155
    %v216 = vpack.c.b16 %v158, %v156
    %v217 = vpack.c.b16 %v161, %v159
    %v218 = vpack.c.b16 %v162, %v160
    %v219 = vpack.c.b16 %v165, %v163
    %v220 = vpack.c.b16 %v166, %v164
    %v221 = vpack.c.b16 %v169, %v167
    %v222 = vpack.c.b16 %v170, %v168
    %v223 = vpack.c.b16 %v173, %v171
    %v224 = vpack.c.b16 %v174, %v172
    %v225 = vpack.c.b16 %v177, %v175
    %v226 = vpack.c.b16 %v178, %v176
    %v227 = vpack.c.b16 %v181, %v179
    %v228 = vpack.c.b16 %v182, %v180
    %v229 = vpack.c.b16 %v185, %v183
    %v230 = vpack.c.b16 %v186, %v184
    %v231 = vpack.c.b16 %v189, %v187
    %v232 = vpack.c.b16 %v190, %v188
    %v233 = vpack.c.b16 %v193, %v191
    %v234 = vpack.c.b16 %v194, %v192
    %v235 = vpack.c.b16 %v197, %v195
    %v236 = vpack.c.b16 %v198, %v196
    %v237 = vpack.c.b16 %v201, %v199
    %v238 = vpack.c.b16 %v202, %v200
    %v239 = vpack.c.b16 %v205, %v203
    %v240 = vpack.c.b16 %v206, %v204
    %v241 = vpack.c.b16 %v209, %v207
    %v242 = vpack.c.b16 %v210, %v208
    %v307 = vunpack.c.l.b16 %v76
    %v308 = vunpack.c.l.b16 %v77
    %v309 = vunpack.c.l.b16 %v78
    %v310 = vunpack.c.l.b16 %v79
    %v311 = vunpack.c.l.b16 %v80
    %v312 = vunpack.c.l.b16 %v81
    %v313 = vunpack.c.l.b16 %v82
    %v314 = vunpack.c.l.b16 %v83
    %v315 = vunpack.c.l.b16 %v84
    %v316 = vunpack.c.l.b16 %v85
    %v317 = vunpack.c.l.b16 %v86
    %v318 = vunpack.c.l.b16 %v87
    %v319 = vunpack.c.l.b16 %v88
    %v320 = vunpack.c.l.b16 %v89
    %v321 = vunpack.c.l.b16 %v90
    %v322 = vunpack.c.l.b16 %v91
    %v323 = vunpack.c.l.b16 %v92
    %v324 = vunpack.c.l.b16 %v93
    %v325 = vunpack.c.l.b16 %v94
    %v326 = vunpack.c.l.b16 %v95
    %v327 = vunpack.c.l.b16 %v96
    %v328 = vunpack.c.l.b16 %v97
    %v329 = vunpack.c.l.b16 %v98
    %v330 = vunpack.c.l.b16 %v99
    %v331 = vunpack.c.l.b16 %v100
    %v332 = vunpack.c.l.b16 %v101
    %v333 = vunpack.c.l.b16 %v102
    %v334 = vunpack.c.l.b16 %v103
    %v335 = vunpack.c.l.b16 %v104
    %v336 = vunpack.c.l.b16 %v105
    %v337 = vunpack.c.l.b16 %v106
    %v338 = vunpack.c.l.b16 %v107
    %v339 = vpack.c.b16 %v308, %v307
    %v340 = vpack.c.b16 %v310, %v309
    %v341 = vpack.c.b16 %v312, %v311
    %v342 = vpack.c.b16 %v314, %v313
    %v343 = vpack.c.b16 %v316, %v315
    %v344 = vpack.c.b16 %v318, %v317
    %v345 = vpack.c.b16 %v320, %v319
    %v346 = vpack.c.b16 %v322, %v321
    %v347 = vpack.c.b16 %v324, %v323
    %v348 = vpack.c.b16 %v326, %v325
    %v349 = vpack.c.b16 %v328, %v327
    %v350 = vpack.c.b16 %v330, %v329
    %v351 = vpack.c.b16 %v332, %v331
    %v352 = vpack.c.b16 %v334, %v333
    %v353 = vpack.c.b16 %v336, %v335
    %v354 = vpack.c.b16 %v338, %v337
    %371 = vmatprep.subr.bf16.mxu0 0
    %372 = vmatpush1.bf16.msra.mxu0 %v339
    %373 = vmatprep.subr.bf16.mxu0 0
    %374 = vmatpush1.bf16.msra.mxu0 %v340
    %375 = vmatprep.subr.bf16.mxu0 0
    %376 = vmatpush1.bf16.msra.mxu0 %v341
    %377 = vmatprep.subr.bf16.mxu0 0
    %378 = vmatpush1.bf16.msra.mxu0 %v342
    %379 = vmatprep.subr.bf16.mxu0 0
    %380 = vmatpush1.bf16.msra.mxu0 %v343
    %381 = vmatprep.subr.bf16.mxu0 0
    %382 = vmatpush1.bf16.msra.mxu0 %v344
    %383 = vmatprep.subr.bf16.mxu0 0
    %384 = vmatpush1.bf16.msra.mxu0 %v345
    %385 = vmatprep.subr.bf16.mxu0 0
    %386 = vmatpush1.bf16.msra.mxu0 %v346
    %387 = vmatprep.subr.bf16.mxu0 0
    %388 = vmatpush1.bf16.msra.mxu0 %v347
    %389 = vmatprep.subr.bf16.mxu0 0
    %390 = vmatpush1.bf16.msra.mxu0 %v348
    %391 = vmatprep.subr.bf16.mxu0 0
    %392 = vmatpush1.bf16.msra.mxu0 %v349
    %393 = vmatprep.subr.bf16.mxu0 0
    %394 = vmatpush1.bf16.msra.mxu0 %v350
    %395 = vmatprep.subr.bf16.mxu0 0
    %396 = vmatpush1.bf16.msra.mxu0 %v351
    %397 = vmatprep.subr.bf16.mxu0 0
    %398 = vmatpush1.bf16.msra.mxu0 %v352
    %399 = vmatprep.subr.bf16.mxu0 0
    %400 = vmatpush1.bf16.msra.mxu0 %v353
    %401 = vmatprep.subr.bf16.mxu0 0
    %402 = vmatpush1.bf16.msra.mxu0 %v354
    %403 = vmatprep.mubr.bf16.mxu0 %v212
    %404 = vmatmul.mubr.bf16.gmra.mrb[0].mxu0 %v211
    %v405 = vpop.f32.mrb[0].mxu0
    %v406 = vadd.f32 %v113, %v405
    %v407 = vpop.f32.mrb[0].mxu0
    %v408 = vpop.f32.mrb[0].mxu0
    %v409 = vadd.f32 %v113, %v408
    %v410 = vpop.f32.mrb[0].mxu0
    %411 = vmatprep.mubr.bf16.mxu0 %v214
    %412 = vmatmul.mubr.bf16.gmra.mrb[0].mxu0 %v213
    %v413 = vpop.f32.mrb[0].mxu0
    %v414 = vadd.f32 %v113, %v413
    %v415 = vpop.f32.mrb[0].mxu0
    %v416 = vpop.f32.mrb[0].mxu0
    %v417 = vadd.f32 %v113, %v416
    %v418 = vpop.f32.mrb[0].mxu0
    %419 = vmatprep.mubr.bf16.mxu0 %v216
    %420 = vmatmul.mubr.bf16.gmra.mrb[0].mxu0 %v215
    %v421 = vpop.f32.mrb[0].mxu0
    %v422 = vadd.f32 %v113, %v421
    %v423 = vpop.f32.mrb[0].mxu0
    %v424 = vpop.f32.mrb[0].mxu0
    %v425 = vadd.f32 %v113, %v424
    %v426 = vpop.f32.mrb[0].mxu0
    %427 = vmatprep.mubr.bf16.mxu0 %v218
    %428 = vmatmul.mubr.bf16.gmra.mrb[0].mxu0 %v217
    %v429 = vpop.f32.mrb[0].mxu0
    %v430 = vadd.f32 %v113, %v429
    %v431 = vpop.f32.mrb[0].mxu0
    %v432 = vpop.f32.mrb[0].mxu0
    %v433 = vadd.f32 %v113, %v432
    %v434 = vpop.f32.mrb[0].mxu0
    %435 = vmatprep.mubr.bf16.mxu0 %v220
    %436 = vmatmul.mubr.bf16.gmra.mrb[0].mxu0 %v219
    %v437 = vpop.f32.mrb[0].mxu0
    %v438 = vadd.f32 %v113, %v437
    %v439 = vpop.f32.mrb[0].mxu0
    %v440 = vpop.f32.mrb[0].mxu0
    %v441 = vadd.f32 %v113, %v440
    %v442 = vpop.f32.mrb[0].mxu0
    %443 = vmatprep.mubr.bf16.mxu0 %v222
    %444 = vmatmul.mubr.bf16.gmra.mrb[0].mxu0 %v221
    %v445 = vpop.f32.mrb[0].mxu0
    %v446 = vadd.f32 %v113, %v445
    %v447 = vpop.f32.mrb[0].mxu0
    %v448 = vpop.f32.mrb[0].mxu0
    %v449 = vadd.f32 %v113, %v448
    %v450 = vpop.f32.mrb[0].mxu0
    %451 = vmatprep.mubr.bf16.mxu0 %v224
    %452 = vmatmul.mubr.bf16.gmra.mrb[0].mxu0 %v223
    %v453 = vpop.f32.mrb[0].mxu0
    %v454 = vadd.f32 %v113, %v453
    %v455 = vpop.f32.mrb[0].mxu0
    %v456 = vpop.f32.mrb[0].mxu0
    %v457 = vadd.f32 %v113, %v456
    %v458 = vpop.f32.mrb[0].mxu0
    %459 = vmatprep.mubr.bf16.mxu0 %v226
    %460 = vmatmul.mubr.bf16.gmra.mrb[0].mxu0 %v225
    %v461 = vpop.f32.mrb[0].mxu0
    %v462 = vadd.f32 %v113, %v461
    %v463 = vpop.f32.mrb[0].mxu0
    %v464 = vpop.f32.mrb[0].mxu0
    %v465 = vadd.f32 %v113, %v464
    %v466 = vpop.f32.mrb[0].mxu0
    %467 = vmatprep.mubr.bf16.mxu0 %v228
    %468 = vmatmul.mubr.bf16.gmra.mrb[0].mxu0 %v227
    %v469 = vpop.f32.mrb[0].mxu0
    %v470 = vadd.f32 %v113, %v469
    %v471 = vpop.f32.mrb[0].mxu0
    %v472 = vpop.f32.mrb[0].mxu0
    %v473 = vadd.f32 %v113, %v472
    %v474 = vpop.f32.mrb[0].mxu0
    %475 = vmatprep.mubr.bf16.mxu0 %v230
    %476 = vmatmul.mubr.bf16.gmra.mrb[0].mxu0 %v229
    %v477 = vpop.f32.mrb[0].mxu0
    %v478 = vadd.f32 %v113, %v477
    %v479 = vpop.f32.mrb[0].mxu0
    %v480 = vpop.f32.mrb[0].mxu0
    %v481 = vadd.f32 %v113, %v480
    %v482 = vpop.f32.mrb[0].mxu0
    %483 = vmatprep.mubr.bf16.mxu0 %v232
    %484 = vmatmul.mubr.bf16.gmra.mrb[0].mxu0 %v231
    %v485 = vpop.f32.mrb[0].mxu0
    %v486 = vadd.f32 %v113, %v485
    %v487 = vpop.f32.mrb[0].mxu0
    %v488 = vpop.f32.mrb[0].mxu0
    %v489 = vadd.f32 %v113, %v488
    %v490 = vpop.f32.mrb[0].mxu0
    %491 = vmatprep.mubr.bf16.mxu0 %v234
    %492 = vmatmul.mubr.bf16.gmra.mrb[0].mxu0 %v233
    %v493 = vpop.f32.mrb[0].mxu0
    %v494 = vadd.f32 %v113, %v493
    %v495 = vpop.f32.mrb[0].mxu0
    %v496 = vpop.f32.mrb[0].mxu0
    %v497 = vadd.f32 %v113, %v496
    %v498 = vpop.f32.mrb[0].mxu0
    %499 = vmatprep.mubr.bf16.mxu0 %v236
    %500 = vmatmul.mubr.bf16.gmra.mrb[0].mxu0 %v235
    %v501 = vpop.f32.mrb[0].mxu0
    %v502 = vadd.f32 %v113, %v501
    %v503 = vpop.f32.mrb[0].mxu0
    %v504 = vpop.f32.mrb[0].mxu0
    %v505 = vadd.f32 %v113, %v504
    %v506 = vpop.f32.mrb[0].mxu0
    %507 = vmatprep.mubr.bf16.mxu0 %v238
    %508 = vmatmul.mubr.bf16.gmra.mrb[0].mxu0 %v237
    %v509 = vpop.f32.mrb[0].mxu0
    %v510 = vadd.f32 %v113, %v509
    %v511 = vpop.f32.mrb[0].mxu0
    %v512 = vpop.f32.mrb[0].mxu0
    %v513 = vadd.f32 %v113, %v512
    %v514 = vpop.f32.mrb[0].mxu0
    %515 = vmatprep.mubr.bf16.mxu0 %v240
    %516 = vmatmul.mubr.bf16.gmra.mrb[0].mxu0 %v239
    %v517 = vpop.f32.mrb[0].mxu0
    %v518 = vadd.f32 %v113, %v517
    %v519 = vpop.f32.mrb[0].mxu0
    %v520 = vpop.f32.mrb[0].mxu0
    %v521 = vadd.f32 %v113, %v520
    %v522 = vpop.f32.mrb[0].mxu0
    %523 = vmatprep.mubr.bf16.mxu0 %v242
    %524 = vmatmul.mubr.bf16.gmra.mrb[0].mxu0 %v241
    %v525 = vpop.f32.mrb[0].mxu0
    %v526 = vadd.f32 %v113, %v525
    %v527 = vpop.f32.mrb[0].mxu0
    %v528 = vpop.f32.mrb[0].mxu0
    %v529 = vadd.f32 %v113, %v528
    %v530 = vpop.f32.mrb[0].mxu0
    %531 = vdwg.mxu0
    %532 = vst [vmem:[#allocation7] sm:$0xff] %v406
    %533 = vst [vmem:[#allocation7 + $0x8] sm:$0xff] %v409
    %534 = vst [vmem:[#allocation7 + $0x10] sm:$0xff] %v414
    %535 = vst [vmem:[#allocation7 + $0x18] sm:$0xff] %v417
    %536 = vst [vmem:[#allocation7 + $0x20] sm:$0xff] %v422
    %537 = vst [vmem:[#allocation7 + $0x28] sm:$0xff] %v425
    %538 = vst [vmem:[#allocation7 + $0x30] sm:$0xff] %v430
    %539 = vst [vmem:[#allocation7 + $0x38] sm:$0xff] %v433
    %540 = vst [vmem:[#allocation7 + $0x40] sm:$0xff] %v438
    %541 = vst [vmem:[#allocation7 + $0x48] sm:$0xff] %v441
    %542 = vst [vmem:[#allocation7 + $0x50] sm:$0xff] %v446
    %543 = vst [vmem:[#allocation7 + $0x58] sm:$0xff] %v449
    %544 = vst [vmem:[#allocation7 + $0x60] sm:$0xff] %v454
    %545 = vst [vmem:[#allocation7 + $0x68] sm:$0xff] %v457
    %546 = vst [vmem:[#allocation7 + $0x70] sm:$0xff] %v462
    %547 = vst [vmem:[#allocation7 + $0x78] sm:$0xff] %v465
    %548 = vst [vmem:[#allocation7 + $0x80] sm:$0xff] %v470
    %549 = vst [vmem:[#allocation7 + $0x88] sm:$0xff] %v473
    %550 = vst [vmem:[#allocation7 + $0x90] sm:$0xff] %v478
    %551 = vst [vmem:[#allocation7 + $0x98] sm:$0xff] %v481
    %552 = vst [vmem:[#allocation7 + $0xa0] sm:$0xff] %v486
    %553 = vst [vmem:[#allocation7 + $0xa8] sm:$0xff] %v489
    %554 = vst [vmem:[#allocation7 + $0xb0] sm:$0xff] %v494
    %555 = vst [vmem:[#allocation7 + $0xb8] sm:$0xff] %v497
    %556 = vst [vmem:[#allocation7 + $0xc0] sm:$0xff] %v502
    %557 = vst [vmem:[#allocation7 + $0xc8] sm:$0xff] %v505
    %558 = vst [vmem:[#allocation7 + $0xd0] sm:$0xff] %v510
    %559 = vst [vmem:[#allocation7 + $0xd8] sm:$0xff] %v513
    %560 = vst [vmem:[#allocation7 + $0xe0] sm:$0xff] %v518
    %561 = vst [vmem:[#allocation7 + $0xe8] sm:$0xff] %v521
    %562 = vst [vmem:[#allocation7 + $0xf0] sm:$0xff] %v526
    %563 = vst [vmem:[#allocation7 + $0xf8] sm:$0xff] %v529
    // Predicated region
    $region22: #{tpu_custom_call.1} parent=1 // pred_check
      _
    $region23: #{tpu_custom_call.1} parent=1 // pred_check_branch
      %565 = sbr.rel (0) target = $region25
    $region24: #{tpu_custom_call.1} parent=1 // pred_region
      %s567 = ssub.s32 4096, 4096
      %568 = vsyncadd [#allocation4], %s567
      %s569 = sshll.u32 [#allocation7], 4
      %s570 = int_to_ptr.vmem [resolvable:$true] %s569
      %575 = dma.vmem_to_hbm [thread:$0]  %s570, 4096, %s3, [#allocation4], 128, 128, 8
    $region25: #{tpu_custom_call.1} parent=1 // pred_fallthru
      _
    // Predicated region
    $region26: #{tpu_custom_call.1} parent=1 // pred_check
      _
    $region27: #{tpu_custom_call.1} parent=1 // pred_check_branch
      %577 = sbr.rel (0) target = $region29
    $region28: #{tpu_custom_call.1} parent=1 // pred_region
      %578 = dma.done [#allocation4], 4096
    $region29: #{tpu_custom_call.1} parent=1 // pred_fallthru
      _
    %579 = vsyncpa [#allocation3], 1
    %580 = vsyncpa [#allocation6], 1
    %581 = vsyncpa [#allocation4], 1

</llo_original>
